<compile_context>
chip_gen: v6e
topology: v6e:2x2x1
jax: 0.10.0
libtpu: 0.0.40
codegen_flags: <defaults>
</compile_context>

<pallas_src>
import functools

import jax
import jax.numpy as jnp
from jax import lax
from jax.experimental import pallas as pl
from jax.experimental.pallas import tpu as pltpu


# ------------------------------- Pallas kernel ------------------------------ #

def _make_scdown_kernel(*, s, k, p, Hs, Ws, Ho, Wo, c1, c2, lo_h, lo_w, ph, pw):
    n_phase = s * s
    hw = Hs * Ws

    def kernel(x_ref, w1_ref, b1_ref, wdw_ref, b2_ref, o_ref, plane_ref):
        # plane_ref holds the zero-padded, phase-decomposed cv1 output y
        # (the depthwise-conv input): plane g=gh*s+gw, rows [lo_h, lo_h+Hs),
        # cols [lo_w, lo_w+Ws) hold y at spatial (hs*s+gh, ws*s+gw).
        plane_ref[...] = jnp.zeros_like(plane_ref)

        w1 = w1_ref[...]            # (c1, c2) bf16
        b1 = b1_ref[...]            # (1, c2)  f32

        # ---- cv1: 1x1 conv + fused BN (Identity act), one MXU matmul / phase --
        for g in range(n_phase):
            xg = x_ref[0, g * hw:(g + 1) * hw]                  # (Hs*Ws, c1) bf16
            y = jnp.dot(xg, w1, preferred_element_type=jnp.float32) + b1
            plane_ref[g * ph + lo_h: g * ph + lo_h + Hs,
                      lo_w: lo_w + Ws, :] = y.reshape(Hs, Ws, c2)

        # ---- cv2: depthwise kxk conv, stride s, + fused BN (Identity act) -----
        # Every tap is a static unstrided window of one phase plane.
        wdw = wdw_ref[...]          # (k*k, c2) f32
        acc = jnp.zeros((Ho, Wo, c2), jnp.float32)
        for dh in range(k):
            gh = (dh - p) % s
            sh = lo_h + (dh - p) // s
            for dw in range(k):
                gw = (dw - p) % s
                sw = lo_w + (dw - p) // s
                g = gh * s + gw
                tap = plane_ref[g * ph + sh: g * ph + sh + Ho,
                                sw: sw + Wo, :]                  # (Ho, Wo, c2)
                wt = wdw[dh * k + dw: dh * k + dw + 1, :]        # (1, c2)
                acc = acc + tap * wt
        o_ref[0] = (acc + b2_ref[...]).astype(o_ref.dtype)

    return kernel


# ------------------------------ kernel wrapper ------------------------------ #

def scdown_forward(x_nchw, params, *, k, s):
    N, c1, H, W = x_nchw.shape
    c2 = params["b1"].shape[-1]
    assert k % 2 == 1, "expects odd kernel size (module default padding=(k-1)//2)"
    p = (k - 1) // 2
    assert H % s == 0 and W % s == 0, "spatial dims must be divisible by stride"
    # TODO(synk): pad/handle H, W not divisible by s.

    Hs, Ws = H // s, W // s
    Ho = (H + 2 * p - k) // s + 1
    Wo = (W + 2 * p - k) // s + 1

    # phase-plane geometry (static python)
    lo_h = -((-p) // s)                                   # = ceil(p / s)
    lo_w = lo_h
    ph = max(lo_h + Hs, lo_h + (Ho - 1) + (k - 1 - p) // s + 1)
    pw = max(lo_w + Ws, lo_w + (Wo - 1) + (k - 1 - p) // s + 1)

    # phase-decomposed, channels-last input: (N, s*s*Hs*Ws, c1), bf16.
    x_ph = (x_nchw.reshape(N, c1, Hs, s, Ws, s)
            .transpose(0, 3, 5, 2, 4, 1)                  # (N, sh, sw, hs, ws, c)
            .reshape(N, s * s * Hs * Ws, c1)
            .astype(jnp.bfloat16))

    kernel = _make_scdown_kernel(s=s, k=k, p=p, Hs=Hs, Ws=Ws, Ho=Ho, Wo=Wo,
                                 c1=c1, c2=c2, lo_h=lo_h, lo_w=lo_w, ph=ph, pw=pw)

    # VMEM budget: double-buffered in/out blocks + resident weights + scratch.
    need = (2 * (s * s * Hs * Ws * c1) * 2
            + 2 * (Ho * Wo * c2) * 4
            + 2 * (c1 * c2 * 2 + (k * k + 2) * c2 * 4)
            + (s * s * ph) * pw * c2 * 4)
    vmem_limit = int(min(64 * 2**20, max(32 * 2**20, 4 * need)))

    out = pl.pallas_call(
        kernel,
        out_shape=jax.ShapeDtypeStruct((N, Ho, Wo, c2), jnp.float32),
        grid_spec=pltpu.PrefetchScalarGridSpec(
            num_scalar_prefetch=0,
            grid=(N,),
            in_specs=[
                pl.BlockSpec((1, s * s * Hs * Ws, c1), lambda n: (n, 0, 0)),
                pl.BlockSpec((c1, c2), lambda n: (0, 0)),
                pl.BlockSpec((1, c2), lambda n: (0, 0)),
                pl.BlockSpec((k * k, c2), lambda n: (0, 0)),
                pl.BlockSpec((1, c2), lambda n: (0, 0)),
            ],
            out_specs=pl.BlockSpec((1, Ho, Wo, c2), lambda n: (n, 0, 0, 0)),
            scratch_shapes=[pltpu.VMEM((s * s * ph, pw, c2), jnp.float32)],
        ),
        compiler_params=pltpu.CompilerParams(
            dimension_semantics=("parallel",),
            vmem_limit_bytes=vmem_limit),
    )(x_ph, params["w1"], params["b1"], params["wdw"], params["b2"])

    return jnp.transpose(out, (0, 3, 1, 2))               # NHWC -> NCHW


# ------------------------------ params / reference --------------------------- #

def _fuse_conv_bn(key, ch_in_per_group, ch_out, ksize):
    ks = jax.random.split(key, 5)
    w = jax.random.normal(ks[0], (ch_out, ch_in_per_group, ksize, ksize),
                          jnp.float32) * 0.1
    gamma = 1.0 + 0.1 * jax.random.normal(ks[1], (ch_out,), jnp.float32)
    beta = 0.1 * jax.random.normal(ks[2], (ch_out,), jnp.float32)
    mean = 0.1 * jax.random.normal(ks[3], (ch_out,), jnp.float32)
    var = jax.random.uniform(ks[4], (ch_out,), jnp.float32, minval=0.5, maxval=1.5)
    scale = gamma / jnp.sqrt(var + 1e-5)
    return w * scale[:, None, None, None], beta - mean * scale


def init_scdown_params(key, c1, c2, k):
    k1, k2 = jax.random.split(key)
    wf1, b1 = _fuse_conv_bn(k1, c1, c2, 1)     # cv1: 1x1, groups=1
    wfd, b2 = _fuse_conv_bn(k2, 1, c2, k)      # cv2: kxk depthwise (groups=c2)
    return {
        "w1": wf1.reshape(c2, c1).T.astype(jnp.bfloat16),                 # (c1, c2)
        "b1": b1.reshape(1, c2).astype(jnp.float32),
        "wdw": wfd.transpose(2, 3, 0, 1).reshape(k * k, c2).astype(jnp.float32),
        "b2": b2.reshape(1, c2).astype(jnp.float32),
    }


def scdown_reference(x_nchw, params, *, k, s):
    c2 = params["b1"].shape[-1]
    p = (k - 1) // 2
    x = jnp.transpose(x_nchw, (0, 2, 3, 1)).astype(jnp.bfloat16).astype(jnp.float32)
    y = jnp.einsum("nhwc,cd->nhwd", x, params["w1"].astype(jnp.float32))
    y = y + params["b1"].reshape(1, 1, 1, c2)
    z = lax.conv_general_dilated(
        y, params["wdw"].reshape(k, k, 1, c2), window_strides=(s, s),
        padding=[(p, p), (p, p)],
        dimension_numbers=("NHWC", "HWIO", "NHWC"), feature_group_count=c2)
    z = z + params["b2"].reshape(1, 1, 1, c2)
    return jnp.transpose(z, (0, 3, 1, 2))


# ----------------------------------- main ------------------------------------ #

if __name__ == "__main__":
    N, c1, c2 = 2, 32, 64
    H = W = 16
    k, s = 3, 2

    key = jax.random.PRNGKey(0)
    kx, kp = jax.random.split(key)
    x = jax.random.normal(kx, (N, c1, H, W), jnp.float32)
    params = init_scdown_params(kp, c1, c2, k)

    fwd = jax.jit(functools.partial(scdown_forward, k=k, s=s))
    out = fwd(x, params)
    jax.block_until_ready(out)

    p = (k - 1) // 2
    Ho = (H + 2 * p - k) // s + 1
    assert out.shape == (N, c2, Ho, Ho), out.shape
    assert bool(jnp.all(jnp.isfinite(out)))

    ref = scdown_reference(x, params, k=k, s=s)
    assert bool(jnp.allclose(out, ref, atol=1e-2, rtol=1e-2)), float(
        jnp.max(jnp.abs(out - ref)))
    print("KERNEL_OK")
</pallas_src>

<mosaic_0001>
module attributes {stable_mosaic.version = 11 : i64} {
  func.func @kernel(%arg0: i32, %arg1: memref<1x256x32xbf16, #tpu.memory_space<vmem>>, %arg2: memref<32x64xbf16, #tpu.memory_space<vmem>>, %arg3: memref<1x64xf32, #tpu.memory_space<vmem>>, %arg4: memref<9x64xf32, #tpu.memory_space<vmem>>, %arg5: memref<1x64xf32, #tpu.memory_space<vmem>>, %arg6: memref<1x8x8x64xf32, #tpu.memory_space<vmem>>, %arg7: memref<36x9x64xf32, #tpu.memory_space<vmem>>) attributes {dimension_semantics = [#tpu.dimension_semantics<parallel>], iteration_bounds = array<i64: 2>, scalar_prefetch = 0 : i64, scratch_operands = 1 : i64, tpu.core_type = #tpu.core_type<tc>, window_params = [{transform_indices = @transform_0, window_bounds = array<i64: 1, 256, 32>}, {pipeline_mode = #tpu.pipeline_mode<synchronous>, transform_indices = @transform_1, window_bounds = array<i64: 32, 64>}, {pipeline_mode = #tpu.pipeline_mode<synchronous>, transform_indices = @transform_2, window_bounds = array<i64: 1, 64>}, {pipeline_mode = #tpu.pipeline_mode<synchronous>, transform_indices = @transform_3, window_bounds = array<i64: 9, 64>}, {pipeline_mode = #tpu.pipeline_mode<synchronous>, transform_indices = @transform_4, window_bounds = array<i64: 1, 64>}, {transform_indices = @transform_5, window_bounds = array<i64: 1, 8, 8, 64>}]} {
    %cst = arith.constant 0.000000e+00 : f32
    %0 = vector.broadcast %cst : f32 to vector<36x9x64xf32>
    %c0 = arith.constant 0 : index
    %c0_0 = arith.constant 0 : index
    %c0_1 = arith.constant 0 : index
    %1 = vector.load %arg7[%c0, %c0_0, %c0_1] : memref<36x9x64xf32, #tpu.memory_space<vmem>>, vector<36x9x64xf32>
    tpu.vector_store %arg7[%c0, %c0_0, %c0_1], %0 {strides = array<i32>} : memref<36x9x64xf32, #tpu.memory_space<vmem>>, vector<36x9x64xf32>,
    %c0_2 = arith.constant 0 : index
    %c0_3 = arith.constant 0 : index
    %2 = vector.load %arg2[%c0_2, %c0_3] : memref<32x64xbf16, #tpu.memory_space<vmem>>, vector<32x64xbf16>
    %c0_4 = arith.constant 0 : index
    %c0_5 = arith.constant 0 : index
    %3 = vector.load %arg3[%c0_4, %c0_5] : memref<1x64xf32, #tpu.memory_space<vmem>>, vector<1x64xf32>
    %c0_6 = arith.constant 0 : index
    %c0_7 = arith.constant 0 : index
    %c0_8 = arith.constant 0 : index
    %4 = vector.load %arg1[%c0_6, %c0_7, %c0_8] : memref<1x256x32xbf16, #tpu.memory_space<vmem>>, vector<1x64x32xbf16>
    %5 = vector.shape_cast %4 : vector<1x64x32xbf16> to vector<64x32xbf16>
    %cst_9 = arith.constant dense<0.000000e+00> : vector<64x64xf32>
    %6 = tpu.matmul %5, %2, %cst_9 {dimension_numbers = #tpu.dot_dimension_numbers<[1], [0], [0], [1], [0, 0, 1, 1], [], []>} : vector<64x32xbf16>, vector<32x64xbf16>, vector<64x64xf32> -> vector<64x64xf32>
    %7 = vector.broadcast %3 : vector<1x64xf32> to vector<64x64xf32>
    %8 = arith.addf %6, %7 : vector<64x64xf32>
    %9 = vector.shape_cast %8 : vector<64x64xf32> to vector<8x8x64xf32>
    %c1 = arith.constant 1 : index
    %c1_10 = arith.constant 1 : index
    %c0_11 = arith.constant 0 : index
    %10 = vector.load %arg7[%c1, %c1_10, %c0_11] : memref<36x9x64xf32, #tpu.memory_space<vmem>>, vector<8x8x64xf32>
    tpu.vector_store %arg7[%c1, %c1_10, %c0_11], %9 {strides = array<i32>} : memref<36x9x64xf32, #tpu.memory_space<vmem>>, vector<8x8x64xf32>,
    %c0_12 = arith.constant 0 : index
    %c64 = arith.constant 64 : index
    %c0_13 = arith.constant 0 : index
    %11 = vector.load %arg1[%c0_12, %c64, %c0_13] : memref<1x256x32xbf16, #tpu.memory_space<vmem>>, vector<1x64x32xbf16>
    %12 = vector.shape_cast %11 : vector<1x64x32xbf16> to vector<64x32xbf16>
    %cst_14 = arith.constant dense<0.000000e+00> : vector<64x64xf32>
    %13 = tpu.matmul %12, %2, %cst_14 {dimension_numbers = #tpu.dot_dimension_numbers<[1], [0], [0], [1], [0, 0, 1, 1], [], []>} : vector<64x32xbf16>, vector<32x64xbf16>, vector<64x64xf32> -> vector<64x64xf32>
    %14 = vector.broadcast %3 : vector<1x64xf32> to vector<64x64xf32>
    %15 = arith.addf %13, %14 : vector<64x64xf32>
    %16 = vector.shape_cast %15 : vector<64x64xf32> to vector<8x8x64xf32>
    %c10 = arith.constant 10 : index
    %c1_15 = arith.constant 1 : index
    %c0_16 = arith.constant 0 : index
    %17 = vector.load %arg7[%c10, %c1_15, %c0_16] : memref<36x9x64xf32, #tpu.memory_space<vmem>>, vector<8x8x64xf32>
    tpu.vector_store %arg7[%c10, %c1_15, %c0_16], %16 {strides = array<i32>} : memref<36x9x64xf32, #tpu.memory_space<vmem>>, vector<8x8x64xf32>,
    %c0_17 = arith.constant 0 : index
    %c128 = arith.constant 128 : index
    %c0_18 = arith.constant 0 : index
    %18 = vector.load %arg1[%c0_17, %c128, %c0_18] : memref<1x256x32xbf16, #tpu.memory_space<vmem>>, vector<1x64x32xbf16>
    %19 = vector.shape_cast %18 : vector<1x64x32xbf16> to vector<64x32xbf16>
    %cst_19 = arith.constant dense<0.000000e+00> : vector<64x64xf32>
    %20 = tpu.matmul %19, %2, %cst_19 {dimension_numbers = #tpu.dot_dimension_numbers<[1], [0], [0], [1], [0, 0, 1, 1], [], []>} : vector<64x32xbf16>, vector<32x64xbf16>, vector<64x64xf32> -> vector<64x64xf32>
    %21 = vector.broadcast %3 : vector<1x64xf32> to vector<64x64xf32>
    %22 = arith.addf %20, %21 : vector<64x64xf32>
    %23 = vector.shape_cast %22 : vector<64x64xf32> to vector<8x8x64xf32>
    %c19 = arith.constant 19 : index
    %c1_20 = arith.constant 1 : index
    %c0_21 = arith.constant 0 : index
    %24 = vector.load %arg7[%c19, %c1_20, %c0_21] : memref<36x9x64xf32, #tpu.memory_space<vmem>>, vector<8x8x64xf32>
    tpu.vector_store %arg7[%c19, %c1_20, %c0_21], %23 {strides = array<i32>} : memref<36x9x64xf32, #tpu.memory_space<vmem>>, vector<8x8x64xf32>,
    %c0_22 = arith.constant 0 : index
    %c192 = arith.constant 192 : index
    %c0_23 = arith.constant 0 : index
    %25 = vector.load %arg1[%c0_22, %c192, %c0_23] : memref<1x256x32xbf16, #tpu.memory_space<vmem>>, vector<1x64x32xbf16>
    %26 = vector.shape_cast %25 : vector<1x64x32xbf16> to vector<64x32xbf16>
    %cst_24 = arith.constant dense<0.000000e+00> : vector<64x64xf32>
    %27 = tpu.matmul %26, %2, %cst_24 {dimension_numbers = #tpu.dot_dimension_numbers<[1], [0], [0], [1], [0, 0, 1, 1], [], []>} : vector<64x32xbf16>, vector<32x64xbf16>, vector<64x64xf32> -> vector<64x64xf32>
    %28 = vector.broadcast %3 : vector<1x64xf32> to vector<64x64xf32>
    %29 = arith.addf %27, %28 : vector<64x64xf32>
    %30 = vector.shape_cast %29 : vector<64x64xf32> to vector<8x8x64xf32>
    %c28 = arith.constant 28 : index
    %c1_25 = arith.constant 1 : index
    %c0_26 = arith.constant 0 : index
    %31 = vector.load %arg7[%c28, %c1_25, %c0_26] : memref<36x9x64xf32, #tpu.memory_space<vmem>>, vector<8x8x64xf32>
    tpu.vector_store %arg7[%c28, %c1_25, %c0_26], %30 {strides = array<i32>} : memref<36x9x64xf32, #tpu.memory_space<vmem>>, vector<8x8x64xf32>,
    %c0_27 = arith.constant 0 : index
    %c0_28 = arith.constant 0 : index
    %32 = vector.load %arg4[%c0_27, %c0_28] : memref<9x64xf32, #tpu.memory_space<vmem>>, vector<9x64xf32>
    %cst_29 = arith.constant 0.000000e+00 : f32
    %33 = vector.broadcast %cst_29 : f32 to vector<8x8x64xf32>
    %c27 = arith.constant 27 : index
    %c0_30 = arith.constant 0 : index
    %c0_31 = arith.constant 0 : index
    %34 = vector.load %arg7[%c27, %c0_30, %c0_31] : memref<36x9x64xf32, #tpu.memory_space<vmem>>, vector<8x8x64xf32>
    %35 = vector.extract_strided_slice %32 {offsets = [0, 0], sizes = [1, 64], strides = [1, 1]} : vector<9x64xf32> to vector<1x64xf32>
    %36 = vector.shape_cast %35 : vector<1x64xf32> to vector<1x1x64xf32>
    %37 = vector.broadcast %36 : vector<1x1x64xf32> to vector<8x8x64xf32>
    %38 = arith.mulf %34, %37 : vector<8x8x64xf32>
    %39 = arith.addf %33, %38 : vector<8x8x64xf32>
    %c18 = arith.constant 18 : index
    %c1_32 = arith.constant 1 : index
    %c0_33 = arith.constant 0 : index
    %40 = vector.load %arg7[%c18, %c1_32, %c0_33] : memref<36x9x64xf32, #tpu.memory_space<vmem>>, vector<8x8x64xf32>
    %41 = vector.extract_strided_slice %32 {offsets = [1, 0], sizes = [1, 64], strides = [1, 1]} : vector<9x64xf32> to vector<1x64xf32>
    %42 = vector.shape_cast %41 : vector<1x64xf32> to vector<1x1x64xf32>
    %43 = vector.broadcast %42 : vector<1x1x64xf32> to vector<8x8x64xf32>
    %44 = arith.mulf %40, %43 : vector<8x8x64xf32>
    %45 = arith.addf %39, %44 : vector<8x8x64xf32>
    %c27_34 = arith.constant 27 : index
    %c1_35 = arith.constant 1 : index
    %c0_36 = arith.constant 0 : index
    %46 = vector.load %arg7[%c27_34, %c1_35, %c0_36] : memref<36x9x64xf32, #tpu.memory_space<vmem>>, vector<8x8x64xf32>
    %47 = vector.extract_strided_slice %32 {offsets = [2, 0], sizes = [1, 64], strides = [1, 1]} : vector<9x64xf32> to vector<1x64xf32>
    %48 = vector.shape_cast %47 : vector<1x64xf32> to vector<1x1x64xf32>
    %49 = vector.broadcast %48 : vector<1x1x64xf32> to vector<8x8x64xf32>
    %50 = arith.mulf %46, %49 : vector<8x8x64xf32>
    %51 = arith.addf %45, %50 : vector<8x8x64xf32>
    %c10_37 = arith.constant 10 : index
    %c0_38 = arith.constant 0 : index
    %c0_39 = arith.constant 0 : index
    %52 = vector.load %arg7[%c10_37, %c0_38, %c0_39] : memref<36x9x64xf32, #tpu.memory_space<vmem>>, vector<8x8x64xf32>
    %53 = vector.extract_strided_slice %32 {offsets = [3, 0], sizes = [1, 64], strides = [1, 1]} : vector<9x64xf32> to vector<1x64xf32>
    %54 = vector.shape_cast %53 : vector<1x64xf32> to vector<1x1x64xf32>
    %55 = vector.broadcast %54 : vector<1x1x64xf32> to vector<8x8x64xf32>
    %56 = arith.mulf %52, %55 : vector<8x8x64xf32>
    %57 = arith.addf %51, %56 : vector<8x8x64xf32>
    %c1_40 = arith.constant 1 : index
    %c1_41 = arith.constant 1 : index
    %c0_42 = arith.constant 0 : index
    %58 = vector.load %arg7[%c1_40, %c1_41, %c0_42] : memref<36x9x64xf32, #tpu.memory_space<vmem>>, vector<8x8x64xf32>
    %59 = vector.extract_strided_slice %32 {offsets = [4, 0], sizes = [1, 64], strides = [1, 1]} : vector<9x64xf32> to vector<1x64xf32>
    %60 = vector.shape_cast %59 : vector<1x64xf32> to vector<1x1x64xf32>
    %61 = vector.broadcast %60 : vector<1x1x64xf32> to vector<8x8x64xf32>
    %62 = arith.mulf %58, %61 : vector<8x8x64xf32>
    %63 = arith.addf %57, %62 : vector<8x8x64xf32>
    %c10_43 = arith.constant 10 : index
    %c1_44 = arith.constant 1 : index
    %c0_45 = arith.constant 0 : index
    %64 = vector.load %arg7[%c10_43, %c1_44, %c0_45] : memref<36x9x64xf32, #tpu.memory_space<vmem>>, vector<8x8x64xf32>
    %65 = vector.extract_strided_slice %32 {offsets = [5, 0], sizes = [1, 64], strides = [1, 1]} : vector<9x64xf32> to vector<1x64xf32>
    %66 = vector.shape_cast %65 : vector<1x64xf32> to vector<1x1x64xf32>
    %67 = vector.broadcast %66 : vector<1x1x64xf32> to vector<8x8x64xf32>
    %68 = arith.mulf %64, %67 : vector<8x8x64xf32>
    %69 = arith.addf %63, %68 : vector<8x8x64xf32>
    %c28_46 = arith.constant 28 : index
    %c0_47 = arith.constant 0 : index
    %c0_48 = arith.constant 0 : index
    %70 = vector.load %arg7[%c28_46, %c0_47, %c0_48] : memref<36x9x64xf32, #tpu.memory_space<vmem>>, vector<8x8x64xf32>
    %71 = vector.extract_strided_slice %32 {offsets = [6, 0], sizes = [1, 64], strides = [1, 1]} : vector<9x64xf32> to vector<1x64xf32>
    %72 = vector.shape_cast %71 : vector<1x64xf32> to vector<1x1x64xf32>
    %73 = vector.broadcast %72 : vector<1x1x64xf32> to vector<8x8x64xf32>
    %74 = arith.mulf %70, %73 : vector<8x8x64xf32>
    %75 = arith.addf %69, %74 : vector<8x8x64xf32>
    %c19_49 = arith.constant 19 : index
    %c1_50 = arith.constant 1 : index
    %c0_51 = arith.constant 0 : index
    %76 = vector.load %arg7[%c19_49, %c1_50, %c0_51] : memref<36x9x64xf32, #tpu.memory_space<vmem>>, vector<8x8x64xf32>
    %77 = vector.extract_strided_slice %32 {offsets = [7, 0], sizes = [1, 64], strides = [1, 1]} : vector<9x64xf32> to vector<1x64xf32>
    %78 = vector.shape_cast %77 : vector<1x64xf32> to vector<1x1x64xf32>
    %79 = vector.broadcast %78 : vector<1x1x64xf32> to vector<8x8x64xf32>
    %80 = arith.mulf %76, %79 : vector<8x8x64xf32>
    %81 = arith.addf %75, %80 : vector<8x8x64xf32>
    %c28_52 = arith.constant 28 : index
    %c1_53 = arith.constant 1 : index
    %c0_54 = arith.constant 0 : index
    %82 = vector.load %arg7[%c28_52, %c1_53, %c0_54] : memref<36x9x64xf32, #tpu.memory_space<vmem>>, vector<8x8x64xf32>
    %83 = vector.extract_strided_slice %32 {offsets = [8, 0], sizes = [1, 64], strides = [1, 1]} : vector<9x64xf32> to vector<1x64xf32>
    %84 = vector.shape_cast %83 : vector<1x64xf32> to vector<1x1x64xf32>
    %85 = vector.broadcast %84 : vector<1x1x64xf32> to vector<8x8x64xf32>
    %86 = arith.mulf %82, %85 : vector<8x8x64xf32>
    %87 = arith.addf %81, %86 : vector<8x8x64xf32>
    %c0_55 = arith.constant 0 : index
    %c0_56 = arith.constant 0 : index
    %88 = vector.load %arg5[%c0_55, %c0_56] : memref<1x64xf32, #tpu.memory_space<vmem>>, vector<1x64xf32>
    %89 = vector.shape_cast %88 : vector<1x64xf32> to vector<1x1x64xf32>
    %90 = vector.broadcast %89 : vector<1x1x64xf32> to vector<8x8x64xf32>
    %91 = arith.addf %87, %90 : vector<8x8x64xf32>
    %c0_57 = arith.constant 0 : index
    %c0_58 = arith.constant 0 : index
    %c0_59 = arith.constant 0 : index
    %c0_60 = arith.constant 0 : index
    %92 = vector.load %arg6[%c0_57, %c0_58, %c0_59, %c0_60] : memref<1x8x8x64xf32, #tpu.memory_space<vmem>>, vector<1x8x8x64xf32>
    %93 = vector.shape_cast %92 : vector<1x8x8x64xf32> to vector<8x8x64xf32>
    %94 = vector.shape_cast %91 : vector<8x8x64xf32> to vector<1x8x8x64xf32>
    tpu.vector_store %arg6[%c0_57, %c0_58, %c0_59, %c0_60], %94 {strides = array<i32>} : memref<1x8x8x64xf32, #tpu.memory_space<vmem>>, vector<1x8x8x64xf32>,
    return
  }
  func.func @transform_0(%arg0: i32) -> (i32, i32, i32) {
    %c0_i32 = arith.constant 0 : i32
    %c0_i32_0 = arith.constant 0 : i32
    %c0_i32_1 = arith.constant 0 : i32
    return %arg0, %c0_i32, %c0_i32_0 : i32, i32, i32
  }
  func.func @transform_1(%arg0: i32) -> (i32, i32) {
    %c0_i32 = arith.constant 0 : i32
    %c0_i32_0 = arith.constant 0 : i32
    %c0_i32_1 = arith.constant 0 : i32
    return %c0_i32, %c0_i32_0 : i32, i32
  }
  func.func @transform_2(%arg0: i32) -> (i32, i32) {
    %c0_i32 = arith.constant 0 : i32
    %c0_i32_0 = arith.constant 0 : i32
    %c0_i32_1 = arith.constant 0 : i32
    return %c0_i32, %c0_i32_0 : i32, i32
  }
  func.func @transform_3(%arg0: i32) -> (i32, i32) {
    %c0_i32 = arith.constant 0 : i32
    %c0_i32_0 = arith.constant 0 : i32
    %c0_i32_1 = arith.constant 0 : i32
    return %c0_i32, %c0_i32_0 : i32, i32
  }
  func.func @transform_4(%arg0: i32) -> (i32, i32) {
    %c0_i32 = arith.constant 0 : i32
    %c0_i32_0 = arith.constant 0 : i32
    %c0_i32_1 = arith.constant 0 : i32
    return %c0_i32, %c0_i32_0 : i32, i32
  }
  func.func @transform_5(%arg0: i32) -> (i32, i32, i32, i32) {
    %c0_i32 = arith.constant 0 : i32
    %c0_i32_0 = arith.constant 0 : i32
    %c0_i32_1 = arith.constant 0 : i32
    %c0_i32_2 = arith.constant 0 : i32
    return %arg0, %c0_i32, %c0_i32_0, %c0_i32_1 : i32, i32, i32, i32
  }
}

</mosaic_0001>

<llo_original>
// kernel: scdown_forward.1
$region0: #{scdown_forward.1}
  #allocation0 [shape = 'u32[]', space=smem, size = 0x4, offset = 0x4, fixed_abs, tag = 'smem constant byte address 0x4 - core index']
  #allocation1 [shape = 'u32[144,128]{1,0:T(1,128)}', space=vmem, size = 0x12000, scoped, tag = 'internal scratch']
  #allocation2 [shape = 'f32[36,9,64]{2,1,0:T(8,128)}', space=vmem, size = 0x48000, scoped, tag = 'scratch operand']
  %s0 = inlined_call_operand.vmem [shape: bf16[2,256,32], index: 0, kind: input, shape index: {}]
  %s1 = inlined_call_operand.vmem [shape: bf16[32,64], index: 1, kind: input, shape index: {}]
  %s2 = inlined_call_operand.vmem [shape: f32[1,64], index: 2, kind: input, shape index: {}]
  %s3 = inlined_call_operand.vmem [shape: f32[9,64], index: 3, kind: input, shape index: {}]
  %s4 = inlined_call_operand.vmem [shape: f32[1,64], index: 4, kind: input, shape index: {}]
  %s5 = inlined_call_operand.hbm [shape: f32[2,8,8,64], index: 5, kind: output, shape index: {}]
  %s6 = sld [smem:[#allocation0]]
  $region53: #{scdown_forward.1} parent=0
    _
  %s8 = ssub.s32 1, %s6
  %s9 = scalar_select 0, %s8, %s6
  $region1: #{scdown_forward.1} parent=0
    #allocation3 [shape = 'u8[65536]{0}', space=vmem, size = 0x10000, scoped, tag = 'output window, operand 0']
    #allocation4 [shape = 's32[2]{0}', space=sflag, size = 0x8, scoped, tag = 'scoped memory for scdown_forward.1']
    %10 = vsyncpa [#allocation4], 0
    %s11 = scalar_lea.sflag [#allocation4], 1
    %12 = vsyncpa %s11, 0
    loop: start=0, step=1, limit=4
    $region2: #{scdown_forward.1} parent=1 // loop_pre_header
      _
    $region3: #{scdown_forward.1} parent=1 // loop_header
      %s14 = sphi 0, %s18
      %p15 = scmp.ge.s32.totalorder %s14, 4
      %s24 = sphi 0, %s26
      %s27 = sphi 0, %s24
      %s28 = sphi 0, %s27
      %s44 = sphi 0, %s28
      %s48 = sphi 0, %s48
      %s50 = sphi 0, %s48
      %s51 = sphi 0, %s50
      %s65 = sphi 0, %s51
      %s69 = sphi 0, %s69
      %s71 = sphi 0, %s69
      %s72 = sphi 0, %s71
      %s86 = sphi 0, %s72
      %s90 = sphi 0, %s90
      %s92 = sphi 0, %s90
      %s93 = sphi 0, %s92
      %s107 = sphi 0, %s93
      %s111 = sphi 0, %s111
      %s113 = sphi 0, %s111
      %s114 = sphi 0, %s113
      %s128 = sphi 0, %s114
      %s134 = sphi 0, %s136
      %s137 = sphi 0, %s134
      %s138 = sphi 0, %s137
      %s154 = sphi 0, %s138
    $region4: #{scdown_forward.1} parent=1 // loop_header_branch
      %17 = sbr.rel (%p15) target = $region8
    $region5: #{scdown_forward.1} parent=1 // loop_body
      %s19 = ssub.s32 %s14, 1
      %s20 = ssub.s32 %s14, 2
      %s21 = sadd.s32 %s14, 1
      %s22 = ssub.s32 %s14, %s21
      %p23 = scmp.eq.s32.totalorder %s22, 0
      %s25 = sadd.s32 %s24, 1
      %s26 = scalar_select %p23, %s24, %s25
      %p29 = pneg %p23
      %p30 = scmp.eq.s32.totalorder %s14, 1
      %p31 = por %p29, %p30
      %p32 = scmp.ne.s32.totalorder %s24, %s27
      %p33 = scmp.eq.s32.totalorder %s14, 0
      %p34 = por %p32, %p33
      %p35 = scmp.ne.s32.totalorder %s24, %s27
      %p36 = scmp.eq.s32.totalorder %s19, 1
      %p37 = por %p35, %p36
      %p38 = scmp.ne.s32.totalorder %s27, %s28
      %p39 = scmp.eq.s32.totalorder %s19, 0
      %p40 = por %p38, %p39
      %p41 = scmp.ne.s32.totalorder %s27, %s28
      %p42 = scmp.eq.s32.totalorder %s20, 1
      %p43 = por %p41, %p42
      %p45 = scmp.ne.s32.totalorder %s28, %s44
      %p46 = scmp.eq.s32.totalorder %s20, 0
      %p47 = por %p45, %p46
      %s49 = sadd.s32 %s48, 1
      %p52 = scmp.eq.s32.totalorder %s14, 1
      %p53 = scmp.ne.s32.totalorder %s48, %s50
      %p54 = scmp.eq.s32.totalorder %s14, 0
      %p55 = por %p53, %p54
      %p56 = scmp.ne.s32.totalorder %s48, %s50
      %p57 = scmp.eq.s32.totalorder %s19, 1
      %p58 = por %p56, %p57
      %p59 = scmp.ne.s32.totalorder %s50, %s51
      %p60 = scmp.eq.s32.totalorder %s19, 0
      %p61 = por %p59, %p60
      %p62 = scmp.ne.s32.totalorder %s50, %s51
      %p63 = scmp.eq.s32.totalorder %s20, 1
      %p64 = por %p62, %p63
      %p66 = scmp.ne.s32.totalorder %s51, %s65
      %p67 = scmp.eq.s32.totalorder %s20, 0
      %p68 = por %p66, %p67
      %s70 = sadd.s32 %s69, 1
      %p73 = scmp.eq.s32.totalorder %s14, 1
      %p74 = scmp.ne.s32.totalorder %s69, %s71
      %p75 = scmp.eq.s32.totalorder %s14, 0
      %p76 = por %p74, %p75
      %p77 = scmp.ne.s32.totalorder %s69, %s71
      %p78 = scmp.eq.s32.totalorder %s19, 1
      %p79 = por %p77, %p78
      %p80 = scmp.ne.s32.totalorder %s71, %s72
      %p81 = scmp.eq.s32.totalorder %s19, 0
      %p82 = por %p80, %p81
      %p83 = scmp.ne.s32.totalorder %s71, %s72
      %p84 = scmp.eq.s32.totalorder %s20, 1
      %p85 = por %p83, %p84
      %p87 = scmp.ne.s32.totalorder %s72, %s86
      %p88 = scmp.eq.s32.totalorder %s20, 0
      %p89 = por %p87, %p88
      %s91 = sadd.s32 %s90, 1
      %p94 = scmp.eq.s32.totalorder %s14, 1
      %p95 = scmp.ne.s32.totalorder %s90, %s92
      %p96 = scmp.eq.s32.totalorder %s14, 0
      %p97 = por %p95, %p96
      %p98 = scmp.ne.s32.totalorder %s90, %s92
      %p99 = scmp.eq.s32.totalorder %s19, 1
      %p100 = por %p98, %p99
      %p101 = scmp.ne.s32.totalorder %s92, %s93
      %p102 = scmp.eq.s32.totalorder %s19, 0
      %p103 = por %p101, %p102
      %p104 = scmp.ne.s32.totalorder %s92, %s93
      %p105 = scmp.eq.s32.totalorder %s20, 1
      %p106 = por %p104, %p105
      %p108 = scmp.ne.s32.totalorder %s93, %s107
      %p109 = scmp.eq.s32.totalorder %s20, 0
      %p110 = por %p108, %p109
      %s112 = sadd.s32 %s111, 1
      %p115 = scmp.eq.s32.totalorder %s14, 1
      %p116 = scmp.ne.s32.totalorder %s111, %s113
      %p117 = scmp.eq.s32.totalorder %s14, 0
      %p118 = por %p116, %p117
      %p119 = scmp.ne.s32.totalorder %s111, %s113
      %p120 = scmp.eq.s32.totalorder %s19, 1
      %p121 = por %p119, %p120
      %p122 = scmp.ne.s32.totalorder %s113, %s114
      %p123 = scmp.eq.s32.totalorder %s19, 0
      %p124 = por %p122, %p123
      %p125 = scmp.ne.s32.totalorder %s113, %s114
      %p126 = scmp.eq.s32.totalorder %s20, 1
      %p127 = por %p125, %p126
      %p129 = scmp.ne.s32.totalorder %s114, %s128
      %p130 = scmp.eq.s32.totalorder %s20, 0
      %p131 = por %p129, %p130
      %s132 = ssub.s32 %s14, %s21
      %p133 = scmp.eq.s32.totalorder %s132, 0
      %s135 = sadd.s32 %s134, 1
      %s136 = scalar_select %p133, %s134, %s135
      %p139 = pneg %p133
      %p140 = scmp.eq.s32.totalorder %s14, 1
      %p141 = por %p139, %p140
      %p142 = scmp.ne.s32.totalorder %s134, %s137
      %p143 = scmp.eq.s32.totalorder %s14, 0
      %p144 = por %p142, %p143
      %p145 = scmp.ne.s32.totalorder %s134, %s137
      %p146 = scmp.eq.s32.totalorder %s19, 1
      %p147 = por %p145, %p146
      %p148 = scmp.ne.s32.totalorder %s137, %s138
      %p149 = scmp.eq.s32.totalorder %s19, 0
      %p150 = por %p148, %p149
      %p151 = scmp.ne.s32.totalorder %s137, %s138
      %p152 = scmp.eq.s32.totalorder %s20, 1
      %p153 = por %p151, %p152
      %p155 = scmp.ne.s32.totalorder %s138, %s154
      %p156 = scmp.eq.s32.totalorder %s20, 0
      %p157 = por %p155, %p156
      %p158 = scmp.le.s32.totalorder 1, %s14
      %p159 = scmp.lt.s32.totalorder %s14, 3
      %p160 = pnand %p158, %p159
      %p161 = pneg %p160
      // Predicated region
      $region9: #{scdown_forward.1} parent=5 // pred_check
        _
      $region10: #{scdown_forward.1} parent=5 // pred_check_branch
        %163 = sbr.rel (%p160) target = $region12
      $region11: #{scdown_forward.1} parent=5 // pred_region
        %s164 = ssub.s32 %s14, 1
        // Predicated region
        $region13: #{scdown_forward.1} parent=11 // pred_check
          %p165 = pneg %p61
        $region14: #{scdown_forward.1} parent=11 // pred_check_branch
          %167 = sbr.rel (%p165) target = $region16
        $region15: #{scdown_forward.1} parent=11 // pred_region
          _
        $region16: #{scdown_forward.1} parent=11 // pred_fallthru
          _
        // Predicated region
        $region17: #{scdown_forward.1} parent=11 // pred_check
          %p168 = pneg %p82
        $region18: #{scdown_forward.1} parent=11 // pred_check_branch
          %170 = sbr.rel (%p168) target = $region20
        $region19: #{scdown_forward.1} parent=11 // pred_region
          _
        $region20: #{scdown_forward.1} parent=11 // pred_fallthru
          _
        // Predicated region
        $region21: #{scdown_forward.1} parent=11 // pred_check
          %p171 = pneg %p103
        $region22: #{scdown_forward.1} parent=11 // pred_check_branch
          %173 = sbr.rel (%p171) target = $region24
        $region23: #{scdown_forward.1} parent=11 // pred_region
          _
        $region24: #{scdown_forward.1} parent=11 // pred_fallthru
          _
        // Predicated region
        $region25: #{scdown_forward.1} parent=11 // pred_check
          %p174 = pneg %p124
        $region26: #{scdown_forward.1} parent=11 // pred_check_branch
          %176 = sbr.rel (%p174) target = $region28
        $region27: #{scdown_forward.1} parent=11 // pred_region
          _
        $region28: #{scdown_forward.1} parent=11 // pred_fallthru
          _
      $region12: #{scdown_forward.1} parent=5 // pred_fallthru
        _
      %p177 = scmp.lt.s32.totalorder %s14, 2
      // Predicated region
      $region29: #{scdown_forward.1} parent=5 // pred_check
        %p178 = pneg %p177
      $region30: #{scdown_forward.1} parent=5 // pred_check_branch
        %180 = sbr.rel (%p178) target = $region32
      $region31: #{scdown_forward.1} parent=5 // pred_region
        // Predicated region
        $region33: #{scdown_forward.1} parent=31 // pred_check
          %p181 = pneg %p34
        $region34: #{scdown_forward.1} parent=31 // pred_check_branch
          %183 = sbr.rel (%p181) target = $region36
        $region35: #{scdown_forward.1} parent=31 // pred_region
          %p184 = scmp.lt.s32.totalorder %s14, 1
          %s185 = scalar_select %p184, %s14, 1
          %s186 = smul.addr %s185, 32
          %s187 = smul.addr %s186, 4
          %s188 = scalar_lea.vmem %s0, %s187
        $region36: #{scdown_forward.1} parent=31 // pred_fallthru
          _
      $region32: #{scdown_forward.1} parent=5 // pred_fallthru
        _
      %p189 = scmp.le.s32.totalorder 1, %s14
      %p190 = scmp.lt.s32.totalorder %s14, 3
      %p191 = pnand %p189, %p190
      %p192 = pneg %p191
      // Predicated region
      $region37: #{scdown_forward.1} parent=5 // pred_check
        _
      $region38: #{scdown_forward.1} parent=5 // pred_check_branch
        %194 = sbr.rel (%p191) target = $region40
      $region39: #{scdown_forward.1} parent=5 // pred_region
        %s195 = ssub.s32 %s14, 1
        %p196 = scmp.lt.s32.totalorder %s19, 1
        %s197 = scalar_select %p196, %s19, 1
        %s198 = smul.addr %s197, 32
        %s199 = smul.addr %s198, 4
        %s200 = scalar_lea.vmem %s0, %s199
        %p201 = pneg %p40
        %p202 = pneg %p37
        %p203 = pneg %p61
        %p204 = pneg %p58
        %p205 = pneg %p82
        %p206 = pneg %p79
        %p207 = pneg %p103
        %p208 = pneg %p100
        %p209 = pneg %p124
        %p210 = pneg %p121
        %p211 = pneg %p150
        %p212 = pneg %p147
        %s213 = sand.u32 %s137, 1
        %s214 = scalar_lea.sflag [#allocation4], %s213
        %s215 = sand.u32 %s137, 1
        %s216 = smul.addr %s215, 64
        %s217 = scalar_lea.vmem [#allocation3], %s216
        %p218 = scmp.lt.s32.totalorder %s19, 1
        %s219 = scalar_select %p218, %s19, 1
        %s220 = smul.addr %s219, 32
        %s221 = smul.addr %s220, 4
        %s222 = scalar_lea.vmem %s0, %s221
        %vm224 = vcmask 523264
        %225 = vst.msk [vmem:[#allocation2] sm:$0xff] %vm224, 0.0
        %vm226 = vcmask 516096
        %227 = vst.msk [vmem:[#allocation2 + $0x8] sm:$0x1] %vm226, 0.0
        %228 = vst.msk [vmem:[#allocation2 + $0x10] sm:$0xff] %vm224, 0.0
        %229 = vst.msk [vmem:[#allocation2 + $0x18] sm:$0x1] %vm226, 0.0
        %230 = vst.msk [vmem:[#allocation2 + $0x20] sm:$0xff] %vm224, 0.0
        %231 = vst.msk [vmem:[#allocation2 + $0x28] sm:$0x1] %vm226, 0.0
        %232 = vst.msk [vmem:[#allocation2 + $0x30] sm:$0xff] %vm224, 0.0
        %233 = vst.msk [vmem:[#allocation2 + $0x38] sm:$0x1] %vm226, 0.0
        %234 = vst.msk [vmem:[#allocation2 + $0x40] sm:$0xff] %vm224, 0.0
        %235 = vst.msk [vmem:[#allocation2 + $0x48] sm:$0x1] %vm226, 0.0
        %236 = vst.msk [vmem:[#allocation2 + $0x50] sm:$0xff] %vm224, 0.0
        %237 = vst.msk [vmem:[#allocation2 + $0x58] sm:$0x1] %vm226, 0.0
        %238 = vst.msk [vmem:[#allocation2 + $0x60] sm:$0xff] %vm224, 0.0
        %239 = vst.msk [vmem:[#allocation2 + $0x68] sm:$0x1] %vm226, 0.0
        %240 = vst.msk [vmem:[#allocation2 + $0x70] sm:$0xff] %vm224, 0.0
        %241 = vst.msk [vmem:[#allocation2 + $0x78] sm:$0x1] %vm226, 0.0
        %242 = vst.msk [vmem:[#allocation2 + $0x80] sm:$0xff] %vm224, 0.0
        %243 = vst.msk [vmem:[#allocation2 + $0x88] sm:$0x1] %vm226, 0.0
        %244 = vst.msk [vmem:[#allocation2 + $0x90] sm:$0xff] %vm224, 0.0
        %245 = vst.msk [vmem:[#allocation2 + $0x98] sm:$0x1] %vm226, 0.0
        %246 = vst.msk [vmem:[#allocation2 + $0xa0] sm:$0xff] %vm224, 0.0
        %247 = vst.msk [vmem:[#allocation2 + $0xa8] sm:$0x1] %vm226, 0.0
        %248 = vst.msk [vmem:[#allocation2 + $0xb0] sm:$0xff] %vm224, 0.0
        %249 = vst.msk [vmem:[#allocation2 + $0xb8] sm:$0x1] %vm226, 0.0
        %250 = vst.msk [vmem:[#allocation2 + $0xc0] sm:$0xff] %vm224, 0.0
        %251 = vst.msk [vmem:[#allocation2 + $0xc8] sm:$0x1] %vm226, 0.0
        %252 = vst.msk [vmem:[#allocation2 + $0xd0] sm:$0xff] %vm224, 0.0
        %253 = vst.msk [vmem:[#allocation2 + $0xd8] sm:$0x1] %vm226, 0.0
        %254 = vst.msk [vmem:[#allocation2 + $0xe0] sm:$0xff] %vm224, 0.0
        %255 = vst.msk [vmem:[#allocation2 + $0xe8] sm:$0x1] %vm226, 0.0
        %256 = vst.msk [vmem:[#allocation2 + $0xf0] sm:$0xff] %vm224, 0.0
        %257 = vst.msk [vmem:[#allocation2 + $0xf8] sm:$0x1] %vm226, 0.0
        %258 = vst.msk [vmem:[#allocation2 + $0x100] sm:$0xff] %vm224, 0.0
        %259 = vst.msk [vmem:[#allocation2 + $0x108] sm:$0x1] %vm226, 0.0
        %260 = vst.msk [vmem:[#allocation2 + $0x110] sm:$0xff] %vm224, 0.0
        %261 = vst.msk [vmem:[#allocation2 + $0x118] sm:$0x1] %vm226, 0.0
        %262 = vst.msk [vmem:[#allocation2 + $0x120] sm:$0xff] %vm224, 0.0
        %263 = vst.msk [vmem:[#allocation2 + $0x128] sm:$0x1] %vm226, 0.0
        %264 = vst.msk [vmem:[#allocation2 + $0x130] sm:$0xff] %vm224, 0.0
        %265 = vst.msk [vmem:[#allocation2 + $0x138] sm:$0x1] %vm226, 0.0
        %266 = vst.msk [vmem:[#allocation2 + $0x140] sm:$0xff] %vm224, 0.0
        %267 = vst.msk [vmem:[#allocation2 + $0x148] sm:$0x1] %vm226, 0.0
        %268 = vst.msk [vmem:[#allocation2 + $0x150] sm:$0xff] %vm224, 0.0
        %269 = vst.msk [vmem:[#allocation2 + $0x158] sm:$0x1] %vm226, 0.0
        %270 = vst.msk [vmem:[#allocation2 + $0x160] sm:$0xff] %vm224, 0.0
        %271 = vst.msk [vmem:[#allocation2 + $0x168] sm:$0x1] %vm226, 0.0
        %272 = vst.msk [vmem:[#allocation2 + $0x170] sm:$0xff] %vm224, 0.0
        %273 = vst.msk [vmem:[#allocation2 + $0x178] sm:$0x1] %vm226, 0.0
        %274 = vst.msk [vmem:[#allocation2 + $0x180] sm:$0xff] %vm224, 0.0
        %275 = vst.msk [vmem:[#allocation2 + $0x188] sm:$0x1] %vm226, 0.0
        %276 = vst.msk [vmem:[#allocation2 + $0x190] sm:$0xff] %vm224, 0.0
        %277 = vst.msk [vmem:[#allocation2 + $0x198] sm:$0x1] %vm226, 0.0
        %278 = vst.msk [vmem:[#allocation2 + $0x1a0] sm:$0xff] %vm224, 0.0
        %279 = vst.msk [vmem:[#allocation2 + $0x1a8] sm:$0x1] %vm226, 0.0
        %280 = vst.msk [vmem:[#allocation2 + $0x1b0] sm:$0xff] %vm224, 0.0
        %281 = vst.msk [vmem:[#allocation2 + $0x1b8] sm:$0x1] %vm226, 0.0
        %282 = vst.msk [vmem:[#allocation2 + $0x1c0] sm:$0xff] %vm224, 0.0
        %283 = vst.msk [vmem:[#allocation2 + $0x1c8] sm:$0x1] %vm226, 0.0
        %284 = vst.msk [vmem:[#allocation2 + $0x1d0] sm:$0xff] %vm224, 0.0
        %285 = vst.msk [vmem:[#allocation2 + $0x1d8] sm:$0x1] %vm226, 0.0
        %286 = vst.msk [vmem:[#allocation2 + $0x1e0] sm:$0xff] %vm224, 0.0
        %287 = vst.msk [vmem:[#allocation2 + $0x1e8] sm:$0x1] %vm226, 0.0
        %288 = vst.msk [vmem:[#allocation2 + $0x1f0] sm:$0xff] %vm224, 0.0
        %289 = vst.msk [vmem:[#allocation2 + $0x1f8] sm:$0x1] %vm226, 0.0
        %290 = vst.msk [vmem:[#allocation2 + $0x200] sm:$0xff] %vm224, 0.0
        %291 = vst.msk [vmem:[#allocation2 + $0x208] sm:$0x1] %vm226, 0.0
        %292 = vst.msk [vmem:[#allocation2 + $0x210] sm:$0xff] %vm224, 0.0
        %293 = vst.msk [vmem:[#allocation2 + $0x218] sm:$0x1] %vm226, 0.0
        %294 = vst.msk [vmem:[#allocation2 + $0x220] sm:$0xff] %vm224, 0.0
        %295 = vst.msk [vmem:[#allocation2 + $0x228] sm:$0x1] %vm226, 0.0
        %296 = vst.msk [vmem:[#allocation2 + $0x230] sm:$0xff] %vm224, 0.0
        %297 = vst.msk [vmem:[#allocation2 + $0x238] sm:$0x1] %vm226, 0.0
        %v298 = vld [vmem:[%s1] sm:$0xf]
        %v299 = vld [vmem:[%s1 + $0x4] sm:$0xf]
        %v300 = vld [vmem:[%s1 + $0x8] sm:$0xf]
        %v301 = vld [vmem:[%s1 + $0xc] sm:$0xf]
        %v302 = vld [vmem:[%s2] sm:$0x1]
        %v303 = vld [vmem:[%s222] sm:$0xf]
        %v304 = vld [vmem:[%s222 + $0x4] sm:$0xf]
        %v305 = vld [vmem:[%s222 + $0x8] sm:$0xf]
        %v306 = vld [vmem:[%s222 + $0xc] sm:$0xf]
        %v307 = vld [vmem:[%s222 + $0x10] sm:$0xf]
        %v308 = vld [vmem:[%s222 + $0x14] sm:$0xf]
        %v309 = vld [vmem:[%s222 + $0x18] sm:$0xf]
        %v310 = vld [vmem:[%s222 + $0x1c] sm:$0xf]
        %v312 = vlaneseq
        %v313 = vshrl.u32 %v312, 7
        %v314 = vsub.s32 0, %v313
        %v315 = vrot.slane %v302, %v314
        %v325 = vunpack.c.l.b16 %v303
        %v326 = vunpack.c.l.b16 %v304
        %v327 = vunpack.c.l.b16 %v305
        %v328 = vunpack.c.l.b16 %v306
        %v329 = vunpack.c.l.b16 %v307
        %v330 = vunpack.c.l.b16 %v308
        %v331 = vunpack.c.l.b16 %v309
        %v332 = vunpack.c.l.b16 %v310
        %v333 = vpack.c.b16 %v326, %v325
        %v334 = vpack.c.b16 %v328, %v327
        %v335 = vpack.c.b16 %v330, %v329
        %v336 = vpack.c.b16 %v332, %v331
        %v341 = vunpack.c.l.b16 %v298
        %v342 = vunpack.c.l.b16 %v299
        %v343 = vunpack.c.l.b16 %v300
        %v344 = vunpack.c.l.b16 %v301
        %v345 = vpack.c.b16 %v342, %v341
        %v346 = vpack.c.b16 %v344, %v343
        %vm349 = vcmask 261120
        %v351 = vsel %vm349, %v333, 0
        %v354 = vsel %vm349, %v334, 0
        %v357 = vsel %vm349, %v335, 0
        %v360 = vsel %vm349, %v336, 0
        %362 = vmatprep.subr.bf16.mxu0 0
        %363 = vmatpush1.bf16.msra.mxu0 0
        %364 = vmatprep.subr.bf16.mxu0 0
        %365 = vmatpush1.bf16.msra.mxu0 0
        %366 = vmatprep.subr.bf16.mxu0 0
        %367 = vmatpush1.bf16.msra.mxu0 0
        %368 = vmatprep.subr.bf16.mxu0 0
        %369 = vmatpush1.bf16.msra.mxu0 0
        %370 = vmatprep.subr.bf16.mxu0 0
        %371 = vmatpush1.bf16.msra.mxu0 0
        %372 = vmatprep.subr.bf16.mxu0 0
        %373 = vmatpush1.bf16.msra.mxu0 0
        %374 = vmatprep.subr.bf16.mxu0 0
        %375 = vmatpush1.bf16.msra.mxu0 %v346
        %376 = vmatprep.subr.bf16.mxu0 0
        %377 = vmatpush1.bf16.msra.mxu0 %v345
        %378 = vmatprep.subr.bf16.mxu0 0
        %379 = vmatpush2.bf16.msra.mxu0 0
        %380 = vmatprep.subr.bf16.mxu0 0
        %381 = vmatpush2.bf16.msra.mxu0 0
        %382 = vmatprep.subr.bf16.mxu0 0
        %383 = vmatpush2.bf16.msra.mxu0 0
        %384 = vmatprep.subr.bf16.mxu0 0
        %385 = vmatpush2.bf16.msra.mxu0 0
        %386 = vmatprep.subr.bf16.mxu0 0
        %387 = vmatpush2.bf16.msra.mxu0 0
        %388 = vmatprep.subr.bf16.mxu0 0
        %389 = vmatpush2.bf16.msra.mxu0 0
        %390 = vmatprep.subr.bf16.mxu0 0
        %391 = vmatpush2.bf16.msra.mxu0 0
        %392 = vmatprep.subr.bf16.mxu0 0
        %393 = vmatpush2.bf16.msra.mxu0 0
        %394 = vmatprep.mubr.bf16.mxu0 0
        %395 = vmatmul.mubr.bf16.gmra.mxu0 %v351
        %v396 = vpop.f32.mrf.mxu0
        %v397 = vadd.f32 %v315, %v396
        %v398 = vpop.f32.mrf.mxu0
        %v399 = vpop.f32.mrf.mxu0
        %v400 = vadd.f32 %v315, %v399
        %v401 = vpop.f32.mrf.mxu0
        %402 = vmatprep.mubr.bf16.mxu0 0
        %403 = vmatmul.mubr.bf16.gmra.mxu0 %v354
        %v404 = vpop.f32.mrf.mxu0
        %v405 = vadd.f32 %v315, %v404
        %v406 = vpop.f32.mrf.mxu0
        %v407 = vpop.f32.mrf.mxu0
        %v408 = vadd.f32 %v315, %v407
        %v409 = vpop.f32.mrf.mxu0
        %410 = vmatprep.mubr.bf16.mxu0 0
        %411 = vmatmul.mubr.bf16.gmra.mxu0 %v357
        %v412 = vpop.f32.mrf.mxu0
        %v413 = vadd.f32 %v315, %v412
        %v414 = vpop.f32.mrf.mxu0
        %v415 = vpop.f32.mrf.mxu0
        %v416 = vadd.f32 %v315, %v415
        %v417 = vpop.f32.mrf.mxu0
        %418 = vmatprep.mubr.bf16.mxu0 0
        %419 = vmatmul.mubr.bf16.gmra.mxu0 %v360
        %v420 = vpop.f32.mrf.mxu0
        %v421 = vadd.f32 %v315, %v420
        %v422 = vpop.f32.mrf.mxu0
        %v423 = vpop.f32.mrf.mxu0
        %v424 = vadd.f32 %v315, %v423
        %v425 = vpop.f32.mrf.mxu0
        %426 = vdwg.mxu0
        %s427 = scalar_lea.vmem [#allocation2], 16
        %428 = vst.msk [vmem:[%s427 + $0x1] sm:$0xff] %vm224, %v397
        %429 = vst.msk [vmem:[%s427 + $0x11] sm:$0xff] %vm224, %v400
        %430 = vst.msk [vmem:[%s427 + $0x21] sm:$0xff] %vm224, %v405
        %431 = vst.msk [vmem:[%s427 + $0x31] sm:$0xff] %vm224, %v408
        %432 = vst.msk [vmem:[%s427 + $0x41] sm:$0xff] %vm224, %v413
        %433 = vst.msk [vmem:[%s427 + $0x51] sm:$0xff] %vm224, %v416
        %434 = vst.msk [vmem:[%s427 + $0x61] sm:$0xff] %vm224, %v421
        %435 = vst.msk [vmem:[%s427 + $0x71] sm:$0xff] %vm224, %v424
        %v436 = vld [vmem:[%s222 + $0x20] sm:$0xf]
        %v437 = vld [vmem:[%s222 + $0x24] sm:$0xf]
        %v438 = vld [vmem:[%s222 + $0x28] sm:$0xf]
        %v439 = vld [vmem:[%s222 + $0x2c] sm:$0xf]
        %v440 = vld [vmem:[%s222 + $0x30] sm:$0xf]
        %v441 = vld [vmem:[%s222 + $0x34] sm:$0xf]
        %v442 = vld [vmem:[%s222 + $0x38] sm:$0xf]
        %v443 = vld [vmem:[%s222 + $0x3c] sm:$0xf]
        %v452 = vunpack.c.l.b16 %v436
        %v453 = vunpack.c.l.b16 %v437
        %v454 = vunpack.c.l.b16 %v438
        %v455 = vunpack.c.l.b16 %v439
        %v456 = vunpack.c.l.b16 %v440
        %v457 = vunpack.c.l.b16 %v441
        %v458 = vunpack.c.l.b16 %v442
        %v459 = vunpack.c.l.b16 %v443
        %v460 = vpack.c.b16 %v453, %v452
        %v461 = vpack.c.b16 %v455, %v454
        %v462 = vpack.c.b16 %v457, %v456
        %v463 = vpack.c.b16 %v459, %v458
        %v465 = vsel %vm349, %v460, 0
        %v468 = vsel %vm349, %v461, 0
        %v471 = vsel %vm349, %v462, 0
        %v474 = vsel %vm349, %v463, 0
        %476 = vmatprep.subr.bf16.mxu0 0
        %477 = vmatpush1.bf16.msra.mxu0 0
        %478 = vmatprep.subr.bf16.mxu0 0
        %479 = vmatpush1.bf16.msra.mxu0 0
        %480 = vmatprep.subr.bf16.mxu0 0
        %481 = vmatpush1.bf16.msra.mxu0 0
        %482 = vmatprep.subr.bf16.mxu0 0
        %483 = vmatpush1.bf16.msra.mxu0 0
        %484 = vmatprep.subr.bf16.mxu0 0
        %485 = vmatpush1.bf16.msra.mxu0 0
        %486 = vmatprep.subr.bf16.mxu0 0
        %487 = vmatpush1.bf16.msra.mxu0 0
        %488 = vmatprep.subr.bf16.mxu0 0
        %489 = vmatpush1.bf16.msra.mxu0 %v346
        %490 = vmatprep.subr.bf16.mxu0 0
        %491 = vmatpush1.bf16.msra.mxu0 %v345
        %492 = vmatprep.subr.bf16.mxu0 0
        %493 = vmatpush2.bf16.msra.mxu0 0
        %494 = vmatprep.subr.bf16.mxu0 0
        %495 = vmatpush2.bf16.msra.mxu0 0
        %496 = vmatprep.subr.bf16.mxu0 0
        %497 = vmatpush2.bf16.msra.mxu0 0
        %498 = vmatprep.subr.bf16.mxu0 0
        %499 = vmatpush2.bf16.msra.mxu0 0
        %500 = vmatprep.subr.bf16.mxu0 0
        %501 = vmatpush2.bf16.msra.mxu0 0
        %502 = vmatprep.subr.bf16.mxu0 0
        %503 = vmatpush2.bf16.msra.mxu0 0
        %504 = vmatprep.subr.bf16.mxu0 0
        %505 = vmatpush2.bf16.msra.mxu0 0
        %506 = vmatprep.subr.bf16.mxu0 0
        %507 = vmatpush2.bf16.msra.mxu0 0
        %508 = vmatprep.mubr.bf16.mxu0 0
        %509 = vmatmul.mubr.bf16.gmra.mxu0 %v465
        %v510 = vpop.f32.mrf.mxu0
        %v511 = vadd.f32 %v315, %v510
        %v512 = vpop.f32.mrf.mxu0
        %v513 = vpop.f32.mrf.mxu0
        %v514 = vadd.f32 %v315, %v513
        %v515 = vpop.f32.mrf.mxu0
        %516 = vmatprep.mubr.bf16.mxu0 0
        %517 = vmatmul.mubr.bf16.gmra.mxu0 %v468
        %v518 = vpop.f32.mrf.mxu0
        %v519 = vadd.f32 %v315, %v518
        %v520 = vpop.f32.mrf.mxu0
        %v521 = vpop.f32.mrf.mxu0
        %v522 = vadd.f32 %v315, %v521
        %v523 = vpop.f32.mrf.mxu0
        %524 = vmatprep.mubr.bf16.mxu0 0
        %525 = vmatmul.mubr.bf16.gmra.mxu0 %v471
        %v526 = vpop.f32.mrf.mxu0
        %v527 = vadd.f32 %v315, %v526
        %v528 = vpop.f32.mrf.mxu0
        %v529 = vpop.f32.mrf.mxu0
        %v530 = vadd.f32 %v315, %v529
        %v531 = vpop.f32.mrf.mxu0
        %532 = vmatprep.mubr.bf16.mxu0 0
        %533 = vmatmul.mubr.bf16.gmra.mxu0 %v474
        %v534 = vpop.f32.mrf.mxu0
        %v535 = vadd.f32 %v315, %v534
        %v536 = vpop.f32.mrf.mxu0
        %v537 = vpop.f32.mrf.mxu0
        %v538 = vadd.f32 %v315, %v537
        %v539 = vpop.f32.mrf.mxu0
        %540 = vdwg.mxu0
        %s541 = scalar_lea.vmem [#allocation2], 160
        %542 = vst.msk [vmem:[%s541 + $0x1] sm:$0xff] %vm224, %v511
        %543 = vst.msk [vmem:[%s541 + $0x11] sm:$0xff] %vm224, %v514
        %544 = vst.msk [vmem:[%s541 + $0x21] sm:$0xff] %vm224, %v519
        %545 = vst.msk [vmem:[%s541 + $0x31] sm:$0xff] %vm224, %v522
        %546 = vst.msk [vmem:[%s541 + $0x41] sm:$0xff] %vm224, %v527
        %547 = vst.msk [vmem:[%s541 + $0x51] sm:$0xff] %vm224, %v530
        %548 = vst.msk [vmem:[%s541 + $0x61] sm:$0xff] %vm224, %v535
        %549 = vst.msk [vmem:[%s541 + $0x71] sm:$0xff] %vm224, %v538
        %v550 = vld [vmem:[%s222 + $0x40] sm:$0xf]
        %v551 = vld [vmem:[%s222 + $0x44] sm:$0xf]
        %v552 = vld [vmem:[%s222 + $0x48] sm:$0xf]
        %v553 = vld [vmem:[%s222 + $0x4c] sm:$0xf]
        %v554 = vld [vmem:[%s222 + $0x50] sm:$0xf]
        %v555 = vld [vmem:[%s222 + $0x54] sm:$0xf]
        %v556 = vld [vmem:[%s222 + $0x58] sm:$0xf]
        %v557 = vld [vmem:[%s222 + $0x5c] sm:$0xf]
        %v566 = vunpack.c.l.b16 %v550
        %v567 = vunpack.c.l.b16 %v551
        %v568 = vunpack.c.l.b16 %v552
        %v569 = vunpack.c.l.b16 %v553
        %v570 = vunpack.c.l.b16 %v554
        %v571 = vunpack.c.l.b16 %v555
        %v572 = vunpack.c.l.b16 %v556
        %v573 = vunpack.c.l.b16 %v557
        %v574 = vpack.c.b16 %v567, %v566
        %v575 = vpack.c.b16 %v569, %v568
        %v576 = vpack.c.b16 %v571, %v570
        %v577 = vpack.c.b16 %v573, %v572
        %v579 = vsel %vm349, %v574, 0
        %v582 = vsel %vm349, %v575, 0
        %v585 = vsel %vm349, %v576, 0
        %v588 = vsel %vm349, %v577, 0
        %590 = vmatprep.subr.bf16.mxu0 0
        %591 = vmatpush1.bf16.msra.mxu0 0
        %592 = vmatprep.subr.bf16.mxu0 0
        %593 = vmatpush1.bf16.msra.mxu0 0
        %594 = vmatprep.subr.bf16.mxu0 0
        %595 = vmatpush1.bf16.msra.mxu0 0
        %596 = vmatprep.subr.bf16.mxu0 0
        %597 = vmatpush1.bf16.msra.mxu0 0
        %598 = vmatprep.subr.bf16.mxu0 0
        %599 = vmatpush1.bf16.msra.mxu0 0
        %600 = vmatprep.subr.bf16.mxu0 0
        %601 = vmatpush1.bf16.msra.mxu0 0
        %602 = vmatprep.subr.bf16.mxu0 0
        %603 = vmatpush1.bf16.msra.mxu0 %v346
        %604 = vmatprep.subr.bf16.mxu0 0
        %605 = vmatpush1.bf16.msra.mxu0 %v345
        %606 = vmatprep.subr.bf16.mxu0 0
        %607 = vmatpush2.bf16.msra.mxu0 0
        %608 = vmatprep.subr.bf16.mxu0 0
        %609 = vmatpush2.bf16.msra.mxu0 0
        %610 = vmatprep.subr.bf16.mxu0 0
        %611 = vmatpush2.bf16.msra.mxu0 0
        %612 = vmatprep.subr.bf16.mxu0 0
        %613 = vmatpush2.bf16.msra.mxu0 0
        %614 = vmatprep.subr.bf16.mxu0 0
        %615 = vmatpush2.bf16.msra.mxu0 0
        %616 = vmatprep.subr.bf16.mxu0 0
        %617 = vmatpush2.bf16.msra.mxu0 0
        %618 = vmatprep.subr.bf16.mxu0 0
        %619 = vmatpush2.bf16.msra.mxu0 0
        %620 = vmatprep.subr.bf16.mxu0 0
        %621 = vmatpush2.bf16.msra.mxu0 0
        %622 = vmatprep.mubr.bf16.mxu0 0
        %623 = vmatmul.mubr.bf16.gmra.mxu0 %v579
        %v624 = vpop.f32.mrf.mxu0
        %v625 = vadd.f32 %v315, %v624
        %v626 = vpop.f32.mrf.mxu0
        %v627 = vpop.f32.mrf.mxu0
        %v628 = vadd.f32 %v315, %v627
        %v629 = vpop.f32.mrf.mxu0
        %630 = vmatprep.mubr.bf16.mxu0 0
        %631 = vmatmul.mubr.bf16.gmra.mxu0 %v582
        %v632 = vpop.f32.mrf.mxu0
        %v633 = vadd.f32 %v315, %v632
        %v634 = vpop.f32.mrf.mxu0
        %v635 = vpop.f32.mrf.mxu0
        %v636 = vadd.f32 %v315, %v635
        %v637 = vpop.f32.mrf.mxu0
        %638 = vmatprep.mubr.bf16.mxu0 0
        %639 = vmatmul.mubr.bf16.gmra.mxu0 %v585
        %v640 = vpop.f32.mrf.mxu0
        %v641 = vadd.f32 %v315, %v640
        %v642 = vpop.f32.mrf.mxu0
        %v643 = vpop.f32.mrf.mxu0
        %v644 = vadd.f32 %v315, %v643
        %v645 = vpop.f32.mrf.mxu0
        %646 = vmatprep.mubr.bf16.mxu0 0
        %647 = vmatmul.mubr.bf16.gmra.mxu0 %v588
        %v648 = vpop.f32.mrf.mxu0
        %v649 = vadd.f32 %v315, %v648
        %v650 = vpop.f32.mrf.mxu0
        %v651 = vpop.f32.mrf.mxu0
        %v652 = vadd.f32 %v315, %v651
        %v653 = vpop.f32.mrf.mxu0
        %654 = vdwg.mxu0
        %s655 = scalar_lea.vmem [#allocation2], 304
        %656 = vst.msk [vmem:[%s655 + $0x1] sm:$0xff] %vm224, %v625
        %657 = vst.msk [vmem:[%s655 + $0x11] sm:$0xff] %vm224, %v628
        %658 = vst.msk [vmem:[%s655 + $0x21] sm:$0xff] %vm224, %v633
        %659 = vst.msk [vmem:[%s655 + $0x31] sm:$0xff] %vm224, %v636
        %660 = vst.msk [vmem:[%s655 + $0x41] sm:$0xff] %vm224, %v641
        %661 = vst.msk [vmem:[%s655 + $0x51] sm:$0xff] %vm224, %v644
        %662 = vst.msk [vmem:[%s655 + $0x61] sm:$0xff] %vm224, %v649
        %663 = vst.msk [vmem:[%s655 + $0x71] sm:$0xff] %vm224, %v652
        %v664 = vld [vmem:[%s222 + $0x60] sm:$0xf]
        %v665 = vld [vmem:[%s222 + $0x64] sm:$0xf]
        %v666 = vld [vmem:[%s222 + $0x68] sm:$0xf]
        %v667 = vld [vmem:[%s222 + $0x6c] sm:$0xf]
        %v668 = vld [vmem:[%s222 + $0x70] sm:$0xf]
        %v669 = vld [vmem:[%s222 + $0x74] sm:$0xf]
        %v670 = vld [vmem:[%s222 + $0x78] sm:$0xf]
        %v671 = vld [vmem:[%s222 + $0x7c] sm:$0xf]
        %v680 = vunpack.c.l.b16 %v664
        %v681 = vunpack.c.l.b16 %v665
        %v682 = vunpack.c.l.b16 %v666
        %v683 = vunpack.c.l.b16 %v667
        %v684 = vunpack.c.l.b16 %v668
        %v685 = vunpack.c.l.b16 %v669
        %v686 = vunpack.c.l.b16 %v670
        %v687 = vunpack.c.l.b16 %v671
        %v688 = vpack.c.b16 %v681, %v680
        %v689 = vpack.c.b16 %v683, %v682
        %v690 = vpack.c.b16 %v685, %v684
        %v691 = vpack.c.b16 %v687, %v686
        %v693 = vsel %vm349, %v688, 0
        %v696 = vsel %vm349, %v689, 0
        %v699 = vsel %vm349, %v690, 0
        %v702 = vsel %vm349, %v691, 0
        %704 = vmatprep.subr.bf16.mxu0 0
        %705 = vmatpush1.bf16.msra.mxu0 0
        %706 = vmatprep.subr.bf16.mxu0 0
        %707 = vmatpush1.bf16.msra.mxu0 0
        %708 = vmatprep.subr.bf16.mxu0 0
        %709 = vmatpush1.bf16.msra.mxu0 0
        %710 = vmatprep.subr.bf16.mxu0 0
        %711 = vmatpush1.bf16.msra.mxu0 0
        %712 = vmatprep.subr.bf16.mxu0 0
        %713 = vmatpush1.bf16.msra.mxu0 0
        %714 = vmatprep.subr.bf16.mxu0 0
        %715 = vmatpush1.bf16.msra.mxu0 0
        %716 = vmatprep.subr.bf16.mxu0 0
        %717 = vmatpush1.bf16.msra.mxu0 %v346
        %718 = vmatprep.subr.bf16.mxu0 0
        %719 = vmatpush1.bf16.msra.mxu0 %v345
        %720 = vmatprep.subr.bf16.mxu0 0
        %721 = vmatpush2.bf16.msra.mxu0 0
        %722 = vmatprep.subr.bf16.mxu0 0
        %723 = vmatpush2.bf16.msra.mxu0 0
        %724 = vmatprep.subr.bf16.mxu0 0
        %725 = vmatpush2.bf16.msra.mxu0 0
        %726 = vmatprep.subr.bf16.mxu0 0
        %727 = vmatpush2.bf16.msra.mxu0 0
        %728 = vmatprep.subr.bf16.mxu0 0
        %729 = vmatpush2.bf16.msra.mxu0 0
        %730 = vmatprep.subr.bf16.mxu0 0
        %731 = vmatpush2.bf16.msra.mxu0 0
        %732 = vmatprep.subr.bf16.mxu0 0
        %733 = vmatpush2.bf16.msra.mxu0 0
        %734 = vmatprep.subr.bf16.mxu0 0
        %735 = vmatpush2.bf16.msra.mxu0 0
        %736 = vmatprep.mubr.bf16.mxu0 0
        %737 = vmatmul.mubr.bf16.gmra.mxu0 %v693
        %v738 = vpop.f32.mrf.mxu0
        %v739 = vadd.f32 %v315, %v738
        %v740 = vpop.f32.mrf.mxu0
        %v741 = vpop.f32.mrf.mxu0
        %v742 = vadd.f32 %v315, %v741
        %v743 = vpop.f32.mrf.mxu0
        %744 = vmatprep.mubr.bf16.mxu0 0
        %745 = vmatmul.mubr.bf16.gmra.mxu0 %v696
        %v746 = vpop.f32.mrf.mxu0
        %v747 = vadd.f32 %v315, %v746
        %v748 = vpop.f32.mrf.mxu0
        %v749 = vpop.f32.mrf.mxu0
        %v750 = vadd.f32 %v315, %v749
        %v751 = vpop.f32.mrf.mxu0
        %752 = vmatprep.mubr.bf16.mxu0 0
        %753 = vmatmul.mubr.bf16.gmra.mxu0 %v699
        %v754 = vpop.f32.mrf.mxu0
        %v755 = vadd.f32 %v315, %v754
        %v756 = vpop.f32.mrf.mxu0
        %v757 = vpop.f32.mrf.mxu0
        %v758 = vadd.f32 %v315, %v757
        %v759 = vpop.f32.mrf.mxu0
        %760 = vmatprep.mubr.bf16.mxu0 0
        %761 = vmatmul.mubr.bf16.gmra.mxu0 %v702
        %v762 = vpop.f32.mrf.mxu0
        %v763 = vadd.f32 %v315, %v762
        %v764 = vpop.f32.mrf.mxu0
        %v765 = vpop.f32.mrf.mxu0
        %v766 = vadd.f32 %v315, %v765
        %v767 = vpop.f32.mrf.mxu0
        %768 = vdwg.mxu0
        %s769 = scalar_lea.vmem [#allocation2], 448
        %770 = vst.msk [vmem:[%s769 + $0x1] sm:$0xff] %vm224, %v739
        %771 = vst.msk [vmem:[%s769 + $0x11] sm:$0xff] %vm224, %v742
        %772 = vst.msk [vmem:[%s769 + $0x21] sm:$0xff] %vm224, %v747
        %773 = vst.msk [vmem:[%s769 + $0x31] sm:$0xff] %vm224, %v750
        %774 = vst.msk [vmem:[%s769 + $0x41] sm:$0xff] %vm224, %v755
        %775 = vst.msk [vmem:[%s769 + $0x51] sm:$0xff] %vm224, %v758
        %776 = vst.msk [vmem:[%s769 + $0x61] sm:$0xff] %vm224, %v763
        %777 = vst.msk [vmem:[%s769 + $0x71] sm:$0xff] %vm224, %v766
        %v778 = vld [vmem:[%s3] sm:$0xff]
        %v779 = vld [vmem:[%s3 + $0x8] sm:$0x1]
        %s780 = scalar_lea.vmem [#allocation2], 432
        %v781 = vld [vmem:[%s780] sm:$0xff]
        %v782 = vld [vmem:[%s780 + $0x10] sm:$0xff]
        %v783 = vld [vmem:[%s780 + $0x20] sm:$0xff]
        %v784 = vld [vmem:[%s780 + $0x30] sm:$0xff]
        %v785 = vld [vmem:[%s780 + $0x40] sm:$0xff]
        %v786 = vld [vmem:[%s780 + $0x50] sm:$0xff]
        %v787 = vld [vmem:[%s780 + $0x60] sm:$0xff]
        %v788 = vld [vmem:[%s780 + $0x70] sm:$0xff]
        %v789 = vlaneseq
        %v790 = vshrl.u32 %v789, 7
        %v791 = vsub.s32 0, %v790
        %v792 = vrot.slane %v778, %v791
        %v793 = vmul.f32 %v781, %v792
        %v794 = vmul.f32 %v782, %v792
        %v795 = vmul.f32 %v783, %v792
        %v796 = vmul.f32 %v784, %v792
        %v797 = vmul.f32 %v785, %v792
        %v798 = vmul.f32 %v786, %v792
        %v799 = vmul.f32 %v787, %v792
        %v800 = vmul.f32 %v788, %v792
        %v801 = vadd.f32 %v793, 0.0
        %v802 = vadd.f32 %v794, 0.0
        %v803 = vadd.f32 %v795, 0.0
        %v804 = vadd.f32 %v796, 0.0
        %v805 = vadd.f32 %v797, 0.0
        %v806 = vadd.f32 %v798, 0.0
        %v807 = vadd.f32 %v799, 0.0
        %v808 = vadd.f32 %v800, 0.0
        %s809 = scalar_lea.vmem [#allocation2], 288
        %v810 = vld [vmem:[%s809 + $0x1] sm:$0xff]
        %v811 = vld [vmem:[%s809 + $0x11] sm:$0xff]
        %v812 = vld [vmem:[%s809 + $0x21] sm:$0xff]
        %v813 = vld [vmem:[%s809 + $0x31] sm:$0xff]
        %v814 = vld [vmem:[%s809 + $0x41] sm:$0xff]
        %v815 = vld [vmem:[%s809 + $0x51] sm:$0xff]
        %v816 = vld [vmem:[%s809 + $0x61] sm:$0xff]
        %v817 = vld [vmem:[%s809 + $0x71] sm:$0xff]
        %v818 = vlaneseq
        %v819 = vshrl.u32 %v818, 7
        %v820 = vsub.s32 1, %v819
        %v821 = vrot.slane %v778, %v820
        %v822 = vmul.f32 %v810, %v821
        %v823 = vmul.f32 %v811, %v821
        %v824 = vmul.f32 %v812, %v821
        %v825 = vmul.f32 %v813, %v821
        %v826 = vmul.f32 %v814, %v821
        %v827 = vmul.f32 %v815, %v821
        %v828 = vmul.f32 %v816, %v821
        %v829 = vmul.f32 %v817, %v821
        %v830 = vadd.f32 %v801, %v822
        %v831 = vadd.f32 %v802, %v823
        %v832 = vadd.f32 %v803, %v824
        %v833 = vadd.f32 %v804, %v825
        %v834 = vadd.f32 %v805, %v826
        %v835 = vadd.f32 %v806, %v827
        %v836 = vadd.f32 %v807, %v828
        %v837 = vadd.f32 %v808, %v829
        %v838 = vld [vmem:[%s780 + $0x1] sm:$0xff]
        %v839 = vld [vmem:[%s780 + $0x11] sm:$0xff]
        %v840 = vld [vmem:[%s780 + $0x21] sm:$0xff]
        %v841 = vld [vmem:[%s780 + $0x31] sm:$0xff]
        %v842 = vld [vmem:[%s780 + $0x41] sm:$0xff]
        %v843 = vld [vmem:[%s780 + $0x51] sm:$0xff]
        %v844 = vld [vmem:[%s780 + $0x61] sm:$0xff]
        %v845 = vld [vmem:[%s780 + $0x71] sm:$0xff]
        %v846 = vlaneseq
        %v847 = vshrl.u32 %v846, 7
        %v848 = vsub.s32 2, %v847
        %v849 = vrot.slane %v778, %v848
        %v850 = vmul.f32 %v838, %v849
        %v851 = vmul.f32 %v839, %v849
        %v852 = vmul.f32 %v840, %v849
        %v853 = vmul.f32 %v841, %v849
        %v854 = vmul.f32 %v842, %v849
        %v855 = vmul.f32 %v843, %v849
        %v856 = vmul.f32 %v844, %v849
        %v857 = vmul.f32 %v845, %v849
        %v858 = vadd.f32 %v830, %v850
        %v859 = vadd.f32 %v831, %v851
        %v860 = vadd.f32 %v832, %v852
        %v861 = vadd.f32 %v833, %v853
        %v862 = vadd.f32 %v834, %v854
        %v863 = vadd.f32 %v835, %v855
        %v864 = vadd.f32 %v836, %v856
        %v865 = vadd.f32 %v837, %v857
        %v866 = vld [vmem:[%s541] sm:$0xff]
        %v867 = vld [vmem:[%s541 + $0x10] sm:$0xff]
        %v868 = vld [vmem:[%s541 + $0x20] sm:$0xff]
        %v869 = vld [vmem:[%s541 + $0x30] sm:$0xff]
        %v870 = vld [vmem:[%s541 + $0x40] sm:$0xff]
        %v871 = vld [vmem:[%s541 + $0x50] sm:$0xff]
        %v872 = vld [vmem:[%s541 + $0x60] sm:$0xff]
        %v873 = vld [vmem:[%s541 + $0x70] sm:$0xff]
        %v874 = vlaneseq
        %v875 = vshrl.u32 %v874, 7
        %v876 = vsub.s32 3, %v875
        %v877 = vrot.slane %v778, %v876
        %v878 = vmul.f32 %v866, %v877
        %v879 = vmul.f32 %v867, %v877
        %v880 = vmul.f32 %v868, %v877
        %v881 = vmul.f32 %v869, %v877
        %v882 = vmul.f32 %v870, %v877
        %v883 = vmul.f32 %v871, %v877
        %v884 = vmul.f32 %v872, %v877
        %v885 = vmul.f32 %v873, %v877
        %v886 = vadd.f32 %v858, %v878
        %v887 = vadd.f32 %v859, %v879
        %v888 = vadd.f32 %v860, %v880
        %v889 = vadd.f32 %v861, %v881
        %v890 = vadd.f32 %v862, %v882
        %v891 = vadd.f32 %v863, %v883
        %v892 = vadd.f32 %v864, %v884
        %v893 = vadd.f32 %v865, %v885
        %v894 = vld [vmem:[%s427 + $0x1] sm:$0xff]
        %v895 = vld [vmem:[%s427 + $0x11] sm:$0xff]
        %v896 = vld [vmem:[%s427 + $0x21] sm:$0xff]
        %v897 = vld [vmem:[%s427 + $0x31] sm:$0xff]
        %v898 = vld [vmem:[%s427 + $0x41] sm:$0xff]
        %v899 = vld [vmem:[%s427 + $0x51] sm:$0xff]
        %v900 = vld [vmem:[%s427 + $0x61] sm:$0xff]
        %v901 = vld [vmem:[%s427 + $0x71] sm:$0xff]
        %v902 = vlaneseq
        %v903 = vshrl.u32 %v902, 7
        %v904 = vsub.s32 4, %v903
        %v905 = vrot.slane %v778, %v904
        %v906 = vmul.f32 %v894, %v905
        %v907 = vmul.f32 %v895, %v905
        %v908 = vmul.f32 %v896, %v905
        %v909 = vmul.f32 %v897, %v905
        %v910 = vmul.f32 %v898, %v905
        %v911 = vmul.f32 %v899, %v905
        %v912 = vmul.f32 %v900, %v905
        %v913 = vmul.f32 %v901, %v905
        %v914 = vadd.f32 %v886, %v906
        %v915 = vadd.f32 %v887, %v907
        %v916 = vadd.f32 %v888, %v908
        %v917 = vadd.f32 %v889, %v909
        %v918 = vadd.f32 %v890, %v910
        %v919 = vadd.f32 %v891, %v911
        %v920 = vadd.f32 %v892, %v912
        %v921 = vadd.f32 %v893, %v913
        %v922 = vld [vmem:[%s541 + $0x1] sm:$0xff]
        %v923 = vld [vmem:[%s541 + $0x11] sm:$0xff]
        %v924 = vld [vmem:[%s541 + $0x21] sm:$0xff]
        %v925 = vld [vmem:[%s541 + $0x31] sm:$0xff]
        %v926 = vld [vmem:[%s541 + $0x41] sm:$0xff]
        %v927 = vld [vmem:[%s541 + $0x51] sm:$0xff]
        %v928 = vld [vmem:[%s541 + $0x61] sm:$0xff]
        %v929 = vld [vmem:[%s541 + $0x71] sm:$0xff]
        %v930 = vlaneseq
        %v931 = vshrl.u32 %v930, 7
        %v932 = vsub.s32 5, %v931
        %v933 = vrot.slane %v778, %v932
        %v934 = vmul.f32 %v922, %v933
        %v935 = vmul.f32 %v923, %v933
        %v936 = vmul.f32 %v924, %v933
        %v937 = vmul.f32 %v925, %v933
        %v938 = vmul.f32 %v926, %v933
        %v939 = vmul.f32 %v927, %v933
        %v940 = vmul.f32 %v928, %v933
        %v941 = vmul.f32 %v929, %v933
        %v942 = vadd.f32 %v914, %v934
        %v943 = vadd.f32 %v915, %v935
        %v944 = vadd.f32 %v916, %v936
        %v945 = vadd.f32 %v917, %v937
        %v946 = vadd.f32 %v918, %v938
        %v947 = vadd.f32 %v919, %v939
        %v948 = vadd.f32 %v920, %v940
        %v949 = vadd.f32 %v921, %v941
        %v950 = vld [vmem:[%s769] sm:$0xff]
        %v951 = vld [vmem:[%s769 + $0x10] sm:$0xff]
        %v952 = vld [vmem:[%s769 + $0x20] sm:$0xff]
        %v953 = vld [vmem:[%s769 + $0x30] sm:$0xff]
        %v954 = vld [vmem:[%s769 + $0x40] sm:$0xff]
        %v955 = vld [vmem:[%s769 + $0x50] sm:$0xff]
        %v956 = vld [vmem:[%s769 + $0x60] sm:$0xff]
        %v957 = vld [vmem:[%s769 + $0x70] sm:$0xff]
        %v958 = vlaneseq
        %v959 = vshrl.u32 %v958, 7
        %v960 = vsub.s32 6, %v959
        %v961 = vrot.slane %v778, %v960
        %v962 = vmul.f32 %v950, %v961
        %v963 = vmul.f32 %v951, %v961
        %v964 = vmul.f32 %v952, %v961
        %v965 = vmul.f32 %v953, %v961
        %v966 = vmul.f32 %v954, %v961
        %v967 = vmul.f32 %v955, %v961
        %v968 = vmul.f32 %v956, %v961
        %v969 = vmul.f32 %v957, %v961
        %v970 = vadd.f32 %v942, %v962
        %v971 = vadd.f32 %v943, %v963
        %v972 = vadd.f32 %v944, %v964
        %v973 = vadd.f32 %v945, %v965
        %v974 = vadd.f32 %v946, %v966
        %v975 = vadd.f32 %v947, %v967
        %v976 = vadd.f32 %v948, %v968
        %v977 = vadd.f32 %v949, %v969
        %v978 = vld [vmem:[%s655 + $0x1] sm:$0xff]
        %v979 = vld [vmem:[%s655 + $0x11] sm:$0xff]
        %v980 = vld [vmem:[%s655 + $0x21] sm:$0xff]
        %v981 = vld [vmem:[%s655 + $0x31] sm:$0xff]
        %v982 = vld [vmem:[%s655 + $0x41] sm:$0xff]
        %v983 = vld [vmem:[%s655 + $0x51] sm:$0xff]
        %v984 = vld [vmem:[%s655 + $0x61] sm:$0xff]
        %v985 = vld [vmem:[%s655 + $0x71] sm:$0xff]
        %v986 = vlaneseq
        %v987 = vshrl.u32 %v986, 7
        %v988 = vsub.s32 7, %v987
        %v989 = vrot.slane %v778, %v988
        %v990 = vmul.f32 %v978, %v989
        %v991 = vmul.f32 %v979, %v989
        %v992 = vmul.f32 %v980, %v989
        %v993 = vmul.f32 %v981, %v989
        %v994 = vmul.f32 %v982, %v989
        %v995 = vmul.f32 %v983, %v989
        %v996 = vmul.f32 %v984, %v989
        %v997 = vmul.f32 %v985, %v989
        %v998 = vadd.f32 %v970, %v990
        %v999 = vadd.f32 %v971, %v991
        %v1000 = vadd.f32 %v972, %v992
        %v1001 = vadd.f32 %v973, %v993
        %v1002 = vadd.f32 %v974, %v994
        %v1003 = vadd.f32 %v975, %v995
        %v1004 = vadd.f32 %v976, %v996
        %v1005 = vadd.f32 %v977, %v997
        %v1006 = vld [vmem:[%s769 + $0x1] sm:$0xff]
        %v1007 = vld [vmem:[%s769 + $0x11] sm:$0xff]
        %v1008 = vld [vmem:[%s769 + $0x21] sm:$0xff]
        %v1009 = vld [vmem:[%s769 + $0x31] sm:$0xff]
        %v1010 = vld [vmem:[%s769 + $0x41] sm:$0xff]
        %v1011 = vld [vmem:[%s769 + $0x51] sm:$0xff]
        %v1012 = vld [vmem:[%s769 + $0x61] sm:$0xff]
        %v1013 = vld [vmem:[%s769 + $0x71] sm:$0xff]
        %v1014 = vlaneseq
        %v1015 = vshrl.u32 %v1014, 7
        %v1016 = vsub.s32 0, %v1015
        %v1017 = vrot.slane %v779, %v1016
        %v1018 = vmul.f32 %v1006, %v1017
        %v1019 = vmul.f32 %v1007, %v1017
        %v1020 = vmul.f32 %v1008, %v1017
        %v1021 = vmul.f32 %v1009, %v1017
        %v1022 = vmul.f32 %v1010, %v1017
        %v1023 = vmul.f32 %v1011, %v1017
        %v1024 = vmul.f32 %v1012, %v1017
        %v1025 = vmul.f32 %v1013, %v1017
        %v1026 = vadd.f32 %v998, %v1018
        %v1027 = vadd.f32 %v999, %v1019
        %v1028 = vadd.f32 %v1000, %v1020
        %v1029 = vadd.f32 %v1001, %v1021
        %v1030 = vadd.f32 %v1002, %v1022
        %v1031 = vadd.f32 %v1003, %v1023
        %v1032 = vadd.f32 %v1004, %v1024
        %v1033 = vadd.f32 %v1005, %v1025
        %v1034 = vld [vmem:[%s4] sm:$0x1]
        %v1036 = vlaneseq
        %v1037 = vshrl.u32 %v1036, 7
        %v1038 = vsub.s32 0, %v1037
        %v1039 = vrot.slane %v1034, %v1038
        %v1041 = vadd.f32 %v1026, %v1039
        %v1042 = vadd.f32 %v1027, %v1039
        %v1043 = vadd.f32 %v1028, %v1039
        %v1044 = vadd.f32 %v1029, %v1039
        %v1045 = vadd.f32 %v1030, %v1039
        %v1046 = vadd.f32 %v1031, %v1039
        %v1047 = vadd.f32 %v1032, %v1039
        %v1048 = vadd.f32 %v1033, %v1039
        %1049 = vst.msk [vmem:[%s217] sm:$0xff] %vm224, %v1041
        %1050 = vst.msk [vmem:[%s217 + $0x8] sm:$0xff] %vm224, %v1042
        %1051 = vst.msk [vmem:[%s217 + $0x10] sm:$0xff] %vm224, %v1043
        %1052 = vst.msk [vmem:[%s217 + $0x18] sm:$0xff] %vm224, %v1044
        %1053 = vst.msk [vmem:[%s217 + $0x20] sm:$0xff] %vm224, %v1045
        %1054 = vst.msk [vmem:[%s217 + $0x28] sm:$0xff] %vm224, %v1046
        %1055 = vst.msk [vmem:[%s217 + $0x30] sm:$0xff] %vm224, %v1047
        %1056 = vst.msk [vmem:[%s217 + $0x38] sm:$0xff] %vm224, %v1048
        %s1057 = sand.u32 %s137, 1
        %s1058 = scalar_lea.sflag [#allocation4], %s1057
        %s1059 = sand.u32 %s137, 1
        %s1060 = smul.addr %s1059, 64
        %s1061 = scalar_lea.vmem [#allocation3], %s1060
        // Predicated region
        $region41: #{scdown_forward.1} parent=39 // pred_check
          %p1062 = pneg %p147
        $region42: #{scdown_forward.1} parent=39 // pred_check_branch
          %1064 = sbr.rel (%p1062) target = $region44
        $region43: #{scdown_forward.1} parent=39 // pred_region
          %s1066 = ssub.s32 1024, 1024
          %1067 = vsyncadd %s1058, %s1066
          %s1068 = smul.addr %s19, 8
          %s1069 = smul.addr %s1068, 128
          %s1070 = scalar_lea.hbm %s5, %s1069
          %s1071 = sshll.u32 %s1061, 4
          %s1072 = int_to_ptr.vmem [resolvable:$true] %s1071
          %1077 = dma.vmem_to_hbm [thread:$0]  %s1072, 1024, %s1070, %s1058, 128, 128, 8
        $region44: #{scdown_forward.1} parent=39 // pred_fallthru
          _
      $region40: #{scdown_forward.1} parent=5 // pred_fallthru
        _
      %p1078 = scmp.le.s32.totalorder 2, %s14
      // Predicated region
      $region45: #{scdown_forward.1} parent=5 // pred_check
        %p1079 = pneg %p1078
      $region46: #{scdown_forward.1} parent=5 // pred_check_branch
        %1081 = sbr.rel (%p1079) target = $region48
      $region47: #{scdown_forward.1} parent=5 // pred_region
        %s1082 = ssub.s32 %s14, 2
        // Predicated region
        $region49: #{scdown_forward.1} parent=47 // pred_check
          %p1083 = pneg %p153
        $region50: #{scdown_forward.1} parent=47 // pred_check_branch
          %1085 = sbr.rel (%p1083) target = $region52
        $region51: #{scdown_forward.1} parent=47 // pred_region
          %s1086 = sand.u32 %s138, 1
          %s1087 = scalar_lea.sflag [#allocation4], %s1086
          %s1088 = sand.u32 %s138, 1
          %s1089 = smul.addr %s1088, 64
          %s1090 = scalar_lea.vmem [#allocation3], %s1089
          %1091 = dma.done %s1087, 1024
        $region52: #{scdown_forward.1} parent=47 // pred_fallthru
          _
      $region48: #{scdown_forward.1} parent=5 // pred_fallthru
        _
    $region6: #{scdown_forward.1} parent=1 // loop_footer
      %s18 = sadd.s32 1, %s14
    $region7: #{scdown_forward.1} parent=1 // loop_footer_branch
      %13 = sbr.rel target = $region3
    $region8: #{scdown_forward.1} parent=1 // loop_exit
      _
    %1092 = vsyncpa [#allocation4], 1
    %s1093 = scalar_lea.sflag [#allocation4], 1
    %1094 = vsyncpa %s1093, 1

</llo_original>
